<compile_context>
chip_gen: v7x
topology: tpu7x:2x2x1
jax: 0.10.0
libtpu: 0.0.40
codegen_flags: <defaults>
</compile_context>

<pallas_src>
import functools

import jax
import jax.numpy as jnp
from jax import lax
from jax.experimental import pallas as pl
from jax.experimental.pallas import tpu as pltpu

PAD = int(224 / 21)  # == 10, as in the PyTorch module __init__


def _shift_kernel(wy_ref, wx_ref, x_ref, o_ref, u_ref, *, block_n, c, h, w):
    """One block of `block_n` batch elements per grid step.

    wy_ref : (block_n, h, h)    row-interpolation matrices (out-row x src-row)
    wx_ref : (block_n, w, w)    col-interpolation matrices (out-col x src-col)
    x_ref  : (block_n, c*h, w)  input images, channels folded into the row dim
    o_ref  : (block_n, c*h, w)  output, same layout
    u_ref  : (c*h, w) f32       VMEM scratch for the width-contracted intermediate
    """
    for b in range(block_n):                      # small static batch block
        wy = wy_ref[b]                            # (h, h)
        wx = wx_ref[b]                            # (w, w)
        # 1) Width contraction, all channels fused into ONE MXU matmul:
        #    u[(ci, i), j] = sum_l x[(ci, i), l] * wx[j, l]
        u_ref[...] = lax.dot_general(
            x_ref[b], wx, (((1,), (1,)), ((), ())),
            preferred_element_type=jnp.float32)
        # 2) Height contraction per channel, stored straight into the slab.
        # TODO(synk): fully fusing this across channels needs an (h, c*w)
        # relayout in VMEM; kept per-channel for lowering robustness (the op is
        # HBM-bandwidth bound, so the extra MXU issues hide under the DMA).
        for ci in range(c):
            rows = slice(ci * h, (ci + 1) * h)
            o_ref[b, rows, :] = jnp.dot(
                wy, u_ref[rows, :],
                preferred_element_type=jnp.float32).astype(o_ref.dtype)


def _interp_matrix_folded(pix, hp, size, pad):
    """Bilinear interpolation matrix with the replicate padding folded in.

    pix : (n, L) float32 pixel coords into the PADDED axis (length hp).
    Returns (n, L, size) float32 weights into the UNPADDED axis:
      * taps outside [0, hp-1] get zero weight (grid_sample padding_mode='zeros')
      * in-range taps are clamped to [0, size-1]  (== replicate padding)
    """
    x0 = jnp.floor(pix)
    x1 = x0 + 1.0
    w1 = pix - x0
    w0 = 1.0 - w1
    idx = jnp.arange(size, dtype=jnp.int32)

    def tap(xi, wi):
        valid = (xi >= 0.0) & (xi <= float(hp - 1))
        wi = jnp.where(valid, wi, 0.0)
        src = jnp.clip(xi.astype(jnp.int32) - pad, 0, size - 1)
        onehot = (src[..., None] == idx[None, None, :]).astype(jnp.float32)
        return onehot * wi[..., None]

    return tap(x0, w0) + tap(x1, w1)


def _pick_block_batch(n, c, h, w, itemsize):
    """Largest batch block that keeps the double-buffered working set modest and
    leaves >= 2 grid steps (keeps both v7x TensorCores busy)."""
    per_elem = 2 * c * h * w * itemsize + (h * h + w * w) * 4
    budget = 8 << 20           # ~8 MiB live; x2 double-buffering stays < 16 MiB
    for b in (16, 8, 4, 2):
        if n % b == 0 and n // b >= 2 and 2 * b * per_elem <= budget:
            return b
    return 1


@jax.jit
def random_shifts_aug(x, shift_key):
    """Forward pass of RandomShiftsAug.  x: (n, c, h, w), h == w."""
    n, c, h, w = x.shape
    assert h == w
    pad = PAD
    hp = h + 2 * pad
    dtype = x.dtype

    # --- grid / weight construction (cheap wrapper glue), always in float32 ---
    eps = 1.0 / hp
    arange = jnp.linspace(-1.0 + eps, 1.0 - eps, hp, dtype=jnp.float32)[:h]

    # torch.randint(0, 2*pad+1, (n,1,1,2)) * 2/(h+2*pad)
    # TODO(synk): torch RNG stream is not reproducible in JAX; jax.random.randint
    # is statistically equivalent but not bit-identical.
    shift = jax.random.randint(shift_key, (n, 2), 0, 2 * pad + 1)
    shift = shift.astype(jnp.float32) * (2.0 / hp)

    gx = arange[None, :] + shift[:, 0:1]     # (n, w)  x-coord, varies with column
    gy = arange[None, :] + shift[:, 1:2]     # (n, h)  y-coord, varies with row

    # grid_sample align_corners=False un-normalization (into the padded image)
    px = ((gx + 1.0) * hp - 1.0) * 0.5       # (n, w)
    py = ((gy + 1.0) * hp - 1.0) * 0.5       # (n, h)

    # Replicate pad + zeros mode folded in -> matrices over the ORIGINAL axes.
    wy = _interp_matrix_folded(py, hp, h, pad).astype(dtype)   # (n, h, h)
    wx = _interp_matrix_folded(px, hp, w, pad).astype(dtype)   # (n, w, w)

    x_flat = x.reshape(n, c * h, w)          # free view: channels folded into rows

    bb = _pick_block_batch(n, c, h, w, x.dtype.itemsize)
    grid = (n // bb,)

    kernel = functools.partial(_shift_kernel, block_n=bb, c=c, h=h, w=w)
    out = pl.pallas_call(
        kernel,
        out_shape=jax.ShapeDtypeStruct((n, c * h, w), dtype),
        grid_spec=pltpu.PrefetchScalarGridSpec(
            num_scalar_prefetch=0,
            grid=grid,
            in_specs=[
                pl.BlockSpec((bb, h, h), lambda i: (i, 0, 0)),
                pl.BlockSpec((bb, w, w), lambda i: (i, 0, 0)),
                pl.BlockSpec((bb, c * h, w), lambda i: (i, 0, 0)),
            ],
            out_specs=pl.BlockSpec((bb, c * h, w), lambda i: (i, 0, 0)),
            scratch_shapes=[pltpu.VMEM((c * h, w), jnp.float32)],
        ),
        compiler_params=pltpu.CompilerParams(
            dimension_semantics=("parallel",),
            vmem_limit_bytes=32 * 1024 * 1024,
        ),
    )(wy, wx, x_flat)
    return out.reshape(n, c, h, w)


# ----------------------------- pure-JAX reference -----------------------------

def _interp_matrix_padded(pix, size):
    """Reference: bilinear matrix into the PADDED axis, zero weight outside."""
    x0 = jnp.floor(pix)
    x1 = x0 + 1.0
    w1 = pix - x0
    w0 = 1.0 - w1
    idx = jnp.arange(size, dtype=pix.dtype)

    def tap(xi, wi):
        onehot = (xi[..., None] == idx[None, None, :]).astype(pix.dtype)
        return onehot * wi[..., None]

    return tap(x0, w0) + tap(x1, w1)


def _reference(x, shift_key):
    """Replicate pad + separable bilinear grid_sample (same math as torch)."""
    n, c, h, w = x.shape
    pad = PAD
    hp = h + 2 * pad
    xpad = jnp.pad(x, ((0, 0), (0, 0), (pad, pad), (pad, pad)), mode="edge")
    xpad = xpad.astype(jnp.float32)
    eps = 1.0 / hp
    arange = jnp.linspace(-1.0 + eps, 1.0 - eps, hp, dtype=jnp.float32)[:h]
    shift = jax.random.randint(shift_key, (n, 2), 0, 2 * pad + 1)
    shift = shift.astype(jnp.float32) * (2.0 / hp)
    px = ((arange[None, :] + shift[:, 0:1] + 1.0) * hp - 1.0) * 0.5
    py = ((arange[None, :] + shift[:, 1:2] + 1.0) * hp - 1.0) * 0.5
    wy = _interp_matrix_padded(py, hp)
    wx = _interp_matrix_padded(px, hp)
    out = jnp.einsum("nik,nckl,njl->ncij", wy, xpad, wx,
                     precision=lax.Precision.HIGHEST)
    return out.astype(x.dtype)


if __name__ == "__main__":
    key = jax.random.PRNGKey(0)
    kx, kshift = jax.random.split(key)

    # Small NCHW input consistent with the module's forward (square images).
    x = jax.random.normal(kx, (2, 4, 16, 16), dtype=jnp.float32)

    out = jax.block_until_ready(random_shifts_aug(x, kshift))

    ref = _reference(x, kshift)
    assert out.shape == x.shape and out.dtype == x.dtype
    assert jnp.allclose(out, ref, atol=1e-3, rtol=1e-3), "kernel/reference mismatch"
    print("KERNEL_OK")
</pallas_src>

<mosaic_0001>
module attributes {stable_mosaic.version = 11 : i64} {
  func.func @_shift_kernel(%arg0: i32, %arg1: memref<1x16x16xf32, #tpu.memory_space<vmem>>, %arg2: memref<1x16x16xf32, #tpu.memory_space<vmem>>, %arg3: memref<1x64x16xf32, #tpu.memory_space<vmem>>, %arg4: memref<1x64x16xf32, #tpu.memory_space<vmem>>, %arg5: memref<64x16xf32, #tpu.memory_space<vmem>>) attributes {dimension_semantics = [#tpu.dimension_semantics<parallel>], iteration_bounds = array<i64: 2>, scalar_prefetch = 0 : i64, scratch_operands = 1 : i64, tpu.core_type = #tpu.core_type<tc>, window_params = [{transform_indices = @transform_0, window_bounds = array<i64: 1, 16, 16>}, {transform_indices = @transform_1, window_bounds = array<i64: 1, 16, 16>}, {transform_indices = @transform_2, window_bounds = array<i64: 1, 64, 16>}, {transform_indices = @transform_3, window_bounds = array<i64: 1, 64, 16>}]} {
    %c0 = arith.constant 0 : index
    %c0_0 = arith.constant 0 : index
    %c0_1 = arith.constant 0 : index
    %0 = vector.load %arg1[%c0, %c0_0, %c0_1] : memref<1x16x16xf32, #tpu.memory_space<vmem>>, vector<1x16x16xf32>
    %1 = vector.shape_cast %0 : vector<1x16x16xf32> to vector<16x16xf32>
    %c0_2 = arith.constant 0 : index
    %c0_3 = arith.constant 0 : index
    %c0_4 = arith.constant 0 : index
    %2 = vector.load %arg2[%c0_2, %c0_3, %c0_4] : memref<1x16x16xf32, #tpu.memory_space<vmem>>, vector<1x16x16xf32>
    %3 = vector.shape_cast %2 : vector<1x16x16xf32> to vector<16x16xf32>
    %c0_5 = arith.constant 0 : index
    %c0_6 = arith.constant 0 : index
    %c0_7 = arith.constant 0 : index
    %4 = vector.load %arg3[%c0_5, %c0_6, %c0_7] : memref<1x64x16xf32, #tpu.memory_space<vmem>>, vector<1x64x16xf32>
    %5 = vector.shape_cast %4 : vector<1x64x16xf32> to vector<64x16xf32>
    %cst = arith.constant dense<0.000000e+00> : vector<64x16xf32>
    %6 = tpu.matmul %5, %3, %cst {dimension_numbers = #tpu.dot_dimension_numbers<[1], [1], [0], [0], [0, 0, 1, 0], [], []>} : vector<64x16xf32>, vector<16x16xf32>, vector<64x16xf32> -> vector<64x16xf32>
    %c0_8 = arith.constant 0 : index
    %c0_9 = arith.constant 0 : index
    %7 = vector.load %arg5[%c0_8, %c0_9] : memref<64x16xf32, #tpu.memory_space<vmem>>, vector<64x16xf32>
    tpu.vector_store %arg5[%c0_8, %c0_9], %6 {strides = array<i32>} : memref<64x16xf32, #tpu.memory_space<vmem>>, vector<64x16xf32>,
    %c0_10 = arith.constant 0 : index
    %c0_11 = arith.constant 0 : index
    %8 = vector.load %arg5[%c0_10, %c0_11] : memref<64x16xf32, #tpu.memory_space<vmem>>, vector<16x16xf32>
    %cst_12 = arith.constant dense<0.000000e+00> : vector<16x16xf32>
    %9 = tpu.matmul %1, %8, %cst_12 {dimension_numbers = #tpu.dot_dimension_numbers<[1], [0], [0], [1], [0, 0, 1, 1], [], []>} : vector<16x16xf32>, vector<16x16xf32>, vector<16x16xf32> -> vector<16x16xf32>
    %c0_13 = arith.constant 0 : index
    %c0_14 = arith.constant 0 : index
    %c0_15 = arith.constant 0 : index
    %10 = vector.load %arg4[%c0_13, %c0_14, %c0_15] : memref<1x64x16xf32, #tpu.memory_space<vmem>>, vector<1x16x16xf32>
    %11 = vector.shape_cast %10 : vector<1x16x16xf32> to vector<16x16xf32>
    %12 = vector.shape_cast %9 : vector<16x16xf32> to vector<1x16x16xf32>
    tpu.vector_store %arg4[%c0_13, %c0_14, %c0_15], %12 {strides = array<i32>} : memref<1x64x16xf32, #tpu.memory_space<vmem>>, vector<1x16x16xf32>,
    %c16 = arith.constant 16 : index
    %c0_16 = arith.constant 0 : index
    %13 = vector.load %arg5[%c16, %c0_16] : memref<64x16xf32, #tpu.memory_space<vmem>>, vector<16x16xf32>
    %cst_17 = arith.constant dense<0.000000e+00> : vector<16x16xf32>
    %14 = tpu.matmul %1, %13, %cst_17 {dimension_numbers = #tpu.dot_dimension_numbers<[1], [0], [0], [1], [0, 0, 1, 1], [], []>} : vector<16x16xf32>, vector<16x16xf32>, vector<16x16xf32> -> vector<16x16xf32>
    %c0_18 = arith.constant 0 : index
    %c16_19 = arith.constant 16 : index
    %c0_20 = arith.constant 0 : index
    %15 = vector.load %arg4[%c0_18, %c16_19, %c0_20] : memref<1x64x16xf32, #tpu.memory_space<vmem>>, vector<1x16x16xf32>
    %16 = vector.shape_cast %15 : vector<1x16x16xf32> to vector<16x16xf32>
    %17 = vector.shape_cast %14 : vector<16x16xf32> to vector<1x16x16xf32>
    tpu.vector_store %arg4[%c0_18, %c16_19, %c0_20], %17 {strides = array<i32>} : memref<1x64x16xf32, #tpu.memory_space<vmem>>, vector<1x16x16xf32>,
    %c32 = arith.constant 32 : index
    %c0_21 = arith.constant 0 : index
    %18 = vector.load %arg5[%c32, %c0_21] : memref<64x16xf32, #tpu.memory_space<vmem>>, vector<16x16xf32>
    %cst_22 = arith.constant dense<0.000000e+00> : vector<16x16xf32>
    %19 = tpu.matmul %1, %18, %cst_22 {dimension_numbers = #tpu.dot_dimension_numbers<[1], [0], [0], [1], [0, 0, 1, 1], [], []>} : vector<16x16xf32>, vector<16x16xf32>, vector<16x16xf32> -> vector<16x16xf32>
    %c0_23 = arith.constant 0 : index
    %c32_24 = arith.constant 32 : index
    %c0_25 = arith.constant 0 : index
    %20 = vector.load %arg4[%c0_23, %c32_24, %c0_25] : memref<1x64x16xf32, #tpu.memory_space<vmem>>, vector<1x16x16xf32>
    %21 = vector.shape_cast %20 : vector<1x16x16xf32> to vector<16x16xf32>
    %22 = vector.shape_cast %19 : vector<16x16xf32> to vector<1x16x16xf32>
    tpu.vector_store %arg4[%c0_23, %c32_24, %c0_25], %22 {strides = array<i32>} : memref<1x64x16xf32, #tpu.memory_space<vmem>>, vector<1x16x16xf32>,
    %c48 = arith.constant 48 : index
    %c0_26 = arith.constant 0 : index
    %23 = vector.load %arg5[%c48, %c0_26] : memref<64x16xf32, #tpu.memory_space<vmem>>, vector<16x16xf32>
    %cst_27 = arith.constant dense<0.000000e+00> : vector<16x16xf32>
    %24 = tpu.matmul %1, %23, %cst_27 {dimension_numbers = #tpu.dot_dimension_numbers<[1], [0], [0], [1], [0, 0, 1, 1], [], []>} : vector<16x16xf32>, vector<16x16xf32>, vector<16x16xf32> -> vector<16x16xf32>
    %c0_28 = arith.constant 0 : index
    %c48_29 = arith.constant 48 : index
    %c0_30 = arith.constant 0 : index
    %25 = vector.load %arg4[%c0_28, %c48_29, %c0_30] : memref<1x64x16xf32, #tpu.memory_space<vmem>>, vector<1x16x16xf32>
    %26 = vector.shape_cast %25 : vector<1x16x16xf32> to vector<16x16xf32>
    %27 = vector.shape_cast %24 : vector<16x16xf32> to vector<1x16x16xf32>
    tpu.vector_store %arg4[%c0_28, %c48_29, %c0_30], %27 {strides = array<i32>} : memref<1x64x16xf32, #tpu.memory_space<vmem>>, vector<1x16x16xf32>,
    return
  }
  func.func @transform_0(%arg0: i32) -> (i32, i32, i32) {
    %c0_i32 = arith.constant 0 : i32
    %c0_i32_0 = arith.constant 0 : i32
    %c0_i32_1 = arith.constant 0 : i32
    return %arg0, %c0_i32, %c0_i32_0 : i32, i32, i32
  }
  func.func @transform_1(%arg0: i32) -> (i32, i32, i32) {
    %c0_i32 = arith.constant 0 : i32
    %c0_i32_0 = arith.constant 0 : i32
    %c0_i32_1 = arith.constant 0 : i32
    return %arg0, %c0_i32, %c0_i32_0 : i32, i32, i32
  }
  func.func @transform_2(%arg0: i32) -> (i32, i32, i32) {
    %c0_i32 = arith.constant 0 : i32
    %c0_i32_0 = arith.constant 0 : i32
    %c0_i32_1 = arith.constant 0 : i32
    return %arg0, %c0_i32, %c0_i32_0 : i32, i32, i32
  }
  func.func @transform_3(%arg0: i32) -> (i32, i32, i32) {
    %c0_i32 = arith.constant 0 : i32
    %c0_i32_0 = arith.constant 0 : i32
    %c0_i32_1 = arith.constant 0 : i32
    return %arg0, %c0_i32, %c0_i32_0 : i32, i32, i32
  }
}

</mosaic_0001>

<llo_original>
// kernel: random_shifts_aug.1
$region0: #{random_shifts_aug.1}
  #allocation0 [shape = 'u32[]', space=smem, size = 0x4, offset = 0x4, fixed_abs, tag = 'smem constant byte address 0x4 - core index']
  #allocation1 [shape = 'u32[144,128]{1,0:T(1,128)}', space=vmem, size = 0x12000, scoped, tag = 'internal scratch']
  #allocation2 [shape = 'f32[64,16]{1,0:T(8,128)}', space=vmem, size = 0x8000, scoped, tag = 'scratch operand']
  %s0 = inlined_call_operand.vmem [shape: f32[2,16,16], index: 0, kind: input, shape index: {}]
  %s1 = inlined_call_operand.vmem [shape: f32[2,16,16], index: 1, kind: input, shape index: {}]
  %s2 = inlined_call_operand.vmem [shape: f32[2,64,16], index: 2, kind: input, shape index: {}]
  %s3 = inlined_call_operand.hbm [shape: f32[2,64,16], index: 3, kind: output, shape index: {}]
  %s4 = sld [smem:[#allocation0]]
  $region45: #{random_shifts_aug.1} parent=0
    _
  %s6 = ssub.s32 1, %s4
  %s7 = scalar_select 0, %s6, %s4
  $region1: #{random_shifts_aug.1} parent=0
    #allocation3 [shape = 'u8[65536]{0}', space=vmem, size = 0x10000, scoped, tag = 'output window, operand 0']
    #allocation4 [shape = 's32[2]{0}', space=sflag, size = 0x8, scoped, tag = 'scoped memory for random_shifts_aug.1']
    %8 = vsyncpa [#allocation4], 0
    %s9 = scalar_lea.sflag [#allocation4], 1
    %10 = vsyncpa %s9, 0
    loop: start=0, step=1, limit=4
    $region2: #{random_shifts_aug.1} parent=1 // loop_pre_header
      _
    $region3: #{random_shifts_aug.1} parent=1 // loop_header
      %s12 = sphi 0, %s16
      %p13 = scmp.ge.s32.totalorder %s12, 4
      %s22 = sphi 0, %s24
      %s25 = sphi 0, %s22
      %s26 = sphi 0, %s25
      %s42 = sphi 0, %s26
      %s48 = sphi 0, %s50
      %s51 = sphi 0, %s48
      %s52 = sphi 0, %s51
      %s68 = sphi 0, %s52
      %s74 = sphi 0, %s76
      %s77 = sphi 0, %s74
      %s78 = sphi 0, %s77
      %s94 = sphi 0, %s78
      %s100 = sphi 0, %s102
      %s103 = sphi 0, %s100
      %s104 = sphi 0, %s103
      %s120 = sphi 0, %s104
    $region4: #{random_shifts_aug.1} parent=1 // loop_header_branch
      %15 = sbr.rel (%p13) target = $region8
    $region5: #{random_shifts_aug.1} parent=1 // loop_body
      %s17 = ssub.s32 %s12, 1
      %s18 = ssub.s32 %s12, 2
      %s19 = sadd.s32 %s12, 1
      %s20 = ssub.s32 %s12, %s19
      %p21 = scmp.eq.s32.totalorder %s20, 0
      %s23 = sadd.s32 %s22, 1
      %s24 = scalar_select %p21, %s22, %s23
      %p27 = pneg %p21
      %p28 = scmp.eq.s32.totalorder %s12, 1
      %p29 = por %p27, %p28
      %p30 = scmp.ne.s32.totalorder %s22, %s25
      %p31 = scmp.eq.s32.totalorder %s12, 0
      %p32 = por %p30, %p31
      %p33 = scmp.ne.s32.totalorder %s22, %s25
      %p34 = scmp.eq.s32.totalorder %s17, 1
      %p35 = por %p33, %p34
      %p36 = scmp.ne.s32.totalorder %s25, %s26
      %p37 = scmp.eq.s32.totalorder %s17, 0
      %p38 = por %p36, %p37
      %p39 = scmp.ne.s32.totalorder %s25, %s26
      %p40 = scmp.eq.s32.totalorder %s18, 1
      %p41 = por %p39, %p40
      %p43 = scmp.ne.s32.totalorder %s26, %s42
      %p44 = scmp.eq.s32.totalorder %s18, 0
      %p45 = por %p43, %p44
      %s46 = ssub.s32 %s12, %s19
      %p47 = scmp.eq.s32.totalorder %s46, 0
      %s49 = sadd.s32 %s48, 1
      %s50 = scalar_select %p47, %s48, %s49
      %p53 = pneg %p47
      %p54 = scmp.eq.s32.totalorder %s12, 1
      %p55 = por %p53, %p54
      %p56 = scmp.ne.s32.totalorder %s48, %s51
      %p57 = scmp.eq.s32.totalorder %s12, 0
      %p58 = por %p56, %p57
      %p59 = scmp.ne.s32.totalorder %s48, %s51
      %p60 = scmp.eq.s32.totalorder %s17, 1
      %p61 = por %p59, %p60
      %p62 = scmp.ne.s32.totalorder %s51, %s52
      %p63 = scmp.eq.s32.totalorder %s17, 0
      %p64 = por %p62, %p63
      %p65 = scmp.ne.s32.totalorder %s51, %s52
      %p66 = scmp.eq.s32.totalorder %s18, 1
      %p67 = por %p65, %p66
      %p69 = scmp.ne.s32.totalorder %s52, %s68
      %p70 = scmp.eq.s32.totalorder %s18, 0
      %p71 = por %p69, %p70
      %s72 = ssub.s32 %s12, %s19
      %p73 = scmp.eq.s32.totalorder %s72, 0
      %s75 = sadd.s32 %s74, 1
      %s76 = scalar_select %p73, %s74, %s75
      %p79 = pneg %p73
      %p80 = scmp.eq.s32.totalorder %s12, 1
      %p81 = por %p79, %p80
      %p82 = scmp.ne.s32.totalorder %s74, %s77
      %p83 = scmp.eq.s32.totalorder %s12, 0
      %p84 = por %p82, %p83
      %p85 = scmp.ne.s32.totalorder %s74, %s77
      %p86 = scmp.eq.s32.totalorder %s17, 1
      %p87 = por %p85, %p86
      %p88 = scmp.ne.s32.totalorder %s77, %s78
      %p89 = scmp.eq.s32.totalorder %s17, 0
      %p90 = por %p88, %p89
      %p91 = scmp.ne.s32.totalorder %s77, %s78
      %p92 = scmp.eq.s32.totalorder %s18, 1
      %p93 = por %p91, %p92
      %p95 = scmp.ne.s32.totalorder %s78, %s94
      %p96 = scmp.eq.s32.totalorder %s18, 0
      %p97 = por %p95, %p96
      %s98 = ssub.s32 %s12, %s19
      %p99 = scmp.eq.s32.totalorder %s98, 0
      %s101 = sadd.s32 %s100, 1
      %s102 = scalar_select %p99, %s100, %s101
      %p105 = pneg %p99
      %p106 = scmp.eq.s32.totalorder %s12, 1
      %p107 = por %p105, %p106
      %p108 = scmp.ne.s32.totalorder %s100, %s103
      %p109 = scmp.eq.s32.totalorder %s12, 0
      %p110 = por %p108, %p109
      %p111 = scmp.ne.s32.totalorder %s100, %s103
      %p112 = scmp.eq.s32.totalorder %s17, 1
      %p113 = por %p111, %p112
      %p114 = scmp.ne.s32.totalorder %s103, %s104
      %p115 = scmp.eq.s32.totalorder %s17, 0
      %p116 = por %p114, %p115
      %p117 = scmp.ne.s32.totalorder %s103, %s104
      %p118 = scmp.eq.s32.totalorder %s18, 1
      %p119 = por %p117, %p118
      %p121 = scmp.ne.s32.totalorder %s104, %s120
      %p122 = scmp.eq.s32.totalorder %s18, 0
      %p123 = por %p121, %p122
      %p124 = scmp.le.s32.totalorder 1, %s12
      %p125 = scmp.lt.s32.totalorder %s12, 3
      %p126 = pnand %p124, %p125
      %p127 = pneg %p126
      // Predicated region
      $region9: #{random_shifts_aug.1} parent=5 // pred_check
        _
      $region10: #{random_shifts_aug.1} parent=5 // pred_check_branch
        %129 = sbr.rel (%p126) target = $region12
      $region11: #{random_shifts_aug.1} parent=5 // pred_region
        %s130 = ssub.s32 %s12, 1
      $region12: #{random_shifts_aug.1} parent=5 // pred_fallthru
        _
      %p131 = scmp.lt.s32.totalorder %s12, 2
      // Predicated region
      $region13: #{random_shifts_aug.1} parent=5 // pred_check
        %p132 = pneg %p131
      $region14: #{random_shifts_aug.1} parent=5 // pred_check_branch
        %134 = sbr.rel (%p132) target = $region16
      $region15: #{random_shifts_aug.1} parent=5 // pred_region
        // Predicated region
        $region17: #{random_shifts_aug.1} parent=15 // pred_check
          %p135 = pneg %p32
        $region18: #{random_shifts_aug.1} parent=15 // pred_check_branch
          %137 = sbr.rel (%p135) target = $region20
        $region19: #{random_shifts_aug.1} parent=15 // pred_region
          %p138 = scmp.lt.s32.totalorder %s12, 1
          %s139 = scalar_select %p138, %s12, 1
          %s140 = smul.addr %s139, 2
          %s141 = smul.addr %s140, 8
          %s142 = scalar_lea.vmem %s0, %s141
        $region20: #{random_shifts_aug.1} parent=15 // pred_fallthru
          _
        // Predicated region
        $region21: #{random_shifts_aug.1} parent=15 // pred_check
          %p143 = pneg %p58
        $region22: #{random_shifts_aug.1} parent=15 // pred_check_branch
          %145 = sbr.rel (%p143) target = $region24
        $region23: #{random_shifts_aug.1} parent=15 // pred_region
          %p146 = scmp.lt.s32.totalorder %s12, 1
          %s147 = scalar_select %p146, %s12, 1
          %s148 = smul.addr %s147, 2
          %s149 = smul.addr %s148, 8
          %s150 = scalar_lea.vmem %s1, %s149
        $region24: #{random_shifts_aug.1} parent=15 // pred_fallthru
          _
        // Predicated region
        $region25: #{random_shifts_aug.1} parent=15 // pred_check
          %p151 = pneg %p84
        $region26: #{random_shifts_aug.1} parent=15 // pred_check_branch
          %153 = sbr.rel (%p151) target = $region28
        $region27: #{random_shifts_aug.1} parent=15 // pred_region
          %p154 = scmp.lt.s32.totalorder %s12, 1
          %s155 = scalar_select %p154, %s12, 1
          %s156 = smul.addr %s155, 8
          %s157 = smul.addr %s156, 8
          %s158 = scalar_lea.vmem %s2, %s157
        $region28: #{random_shifts_aug.1} parent=15 // pred_fallthru
          _
      $region16: #{random_shifts_aug.1} parent=5 // pred_fallthru
        _
      %p159 = scmp.le.s32.totalorder 1, %s12
      %p160 = scmp.lt.s32.totalorder %s12, 3
      %p161 = pnand %p159, %p160
      %p162 = pneg %p161
      // Predicated region
      $region29: #{random_shifts_aug.1} parent=5 // pred_check
        _
      $region30: #{random_shifts_aug.1} parent=5 // pred_check_branch
        %164 = sbr.rel (%p161) target = $region32
      $region31: #{random_shifts_aug.1} parent=5 // pred_region
        %s165 = ssub.s32 %s12, 1
        %p166 = scmp.lt.s32.totalorder %s17, 1
        %s167 = scalar_select %p166, %s17, 1
        %s168 = smul.addr %s167, 2
        %s169 = smul.addr %s168, 8
        %s170 = scalar_lea.vmem %s0, %s169
        %p171 = pneg %p38
        %p172 = pneg %p35
        %p173 = scmp.lt.s32.totalorder %s17, 1
        %s174 = scalar_select %p173, %s17, 1
        %s175 = smul.addr %s174, 2
        %s176 = smul.addr %s175, 8
        %s177 = scalar_lea.vmem %s1, %s176
        %p178 = pneg %p64
        %p179 = pneg %p61
        %p180 = scmp.lt.s32.totalorder %s17, 1
        %s181 = scalar_select %p180, %s17, 1
        %s182 = smul.addr %s181, 8
        %s183 = smul.addr %s182, 8
        %s184 = scalar_lea.vmem %s2, %s183
        %p185 = pneg %p90
        %p186 = pneg %p87
        %p187 = pneg %p116
        %p188 = pneg %p113
        %s189 = sand.u32 %s103, 1
        %s190 = scalar_lea.sflag [#allocation4], %s189
        %s191 = sand.u32 %s103, 1
        %s192 = smul.addr %s191, 64
        %s193 = scalar_lea.vmem [#allocation3], %s192
        %p194 = scmp.lt.s32.totalorder %s17, 1
        %s195 = scalar_select %p194, %s17, 1
        %s196 = smul.addr %s195, 2
        %s197 = smul.addr %s196, 8
        %s198 = scalar_lea.vmem %s0, %s197
        %p199 = scmp.lt.s32.totalorder %s17, 1
        %s200 = scalar_select %p199, %s17, 1
        %s201 = smul.addr %s200, 2
        %s202 = smul.addr %s201, 8
        %s203 = scalar_lea.vmem %s1, %s202
        %p204 = scmp.lt.s32.totalorder %s17, 1
        %s205 = scalar_select %p204, %s17, 1
        %s206 = smul.addr %s205, 8
        %s207 = smul.addr %s206, 8
        %s208 = scalar_lea.vmem %s2, %s207
        %v209 = vld [vmem:[%s198] sm:$0xff]
        %v210 = vld [vmem:[%s198 + $0x8] sm:$0xff]
        %v211 = vld [vmem:[%s203] sm:$0xff]
        %v212 = vld [vmem:[%s203 + $0x8] sm:$0xff]
        %v213 = vld [vmem:[%s208] sm:$0xff]
        %v214 = vld [vmem:[%s208 + $0x8] sm:$0xff]
        %v215 = vld [vmem:[%s208 + $0x10] sm:$0xff]
        %v216 = vld [vmem:[%s208 + $0x18] sm:$0xff]
        %v217 = vld [vmem:[%s208 + $0x20] sm:$0xff]
        %v218 = vld [vmem:[%s208 + $0x28] sm:$0xff]
        %v219 = vld [vmem:[%s208 + $0x30] sm:$0xff]
        %v220 = vld [vmem:[%s208 + $0x38] sm:$0xff]
        %vm221 = vcmask 130048
        %v223 = vsel %vm221, %v213, 0
        %v226 = vsel %vm221, %v214, 0
        %v229 = vsel %vm221, %v215, 0
        %v232 = vsel %vm221, %v216, 0
        %v235 = vsel %vm221, %v217, 0
        %v238 = vsel %vm221, %v218, 0
        %v241 = vsel %vm221, %v219, 0
        %v244 = vsel %vm221, %v220, 0
        %v247 = vsel %vm221, %v211, 0
        %v250 = vsel %vm221, %v212, 0
        %252 = vmatprep.subr.mxu0 0.0
        %253 = vmatpush1.xpose.msra.mxu0 %v247
        %254 = vmatprep.subr.mxu0 0.0
        %255 = vmatpush1.xpose.msra.mxu0 %v250
        %256 = vmatprep.subr.mxu0 0.0
        %257 = vmatpush1.xpose.msra.mxu0 0.0
        %258 = vmatprep.subr.mxu0 0.0
        %259 = vmatpush1.xpose.msra.mxu0 0.0
        %260 = vmatprep.subr.mxu0 0.0
        %261 = vmatpush1.xpose.msra.mxu0 0.0
        %262 = vmatprep.subr.mxu0 0.0
        %263 = vmatpush1.xpose.msra.mxu0 0.0
        %264 = vmatprep.subr.mxu0 0.0
        %265 = vmatpush1.xpose.msra.mxu0 0.0
        %266 = vmatprep.subr.mxu0 0.0
        %267 = vmatpush1.xpose.msra.mxu0 0.0
        %268 = vmatprep.subr.mxu0 0.0
        %269 = vmatpush1.xpose.msra.mxu0 0.0
        %270 = vmatprep.subr.mxu0 0.0
        %271 = vmatpush1.xpose.msra.mxu0 0.0
        %272 = vmatprep.subr.mxu0 0.0
        %273 = vmatpush1.xpose.msra.mxu0 0.0
        %274 = vmatprep.subr.mxu0 0.0
        %275 = vmatpush1.xpose.msra.mxu0 0.0
        %276 = vmatprep.subr.mxu0 0.0
        %277 = vmatpush1.xpose.msra.mxu0 0.0
        %278 = vmatprep.subr.mxu0 0.0
        %279 = vmatpush1.xpose.msra.mxu0 0.0
        %280 = vmatprep.subr.mxu0 0.0
        %281 = vmatpush1.xpose.msra.mxu0 0.0
        %282 = vmatprep.subr.mxu0 0.0
        %283 = vmatpush1.xpose.msra.mxu0 0.0
        %284 = vmatprep.subr.mxu0 0.0
        %285 = vmatpush1.xpose.msra.mxu0 0.0
        %286 = vmatprep.subr.mxu0 0.0
        %287 = vmatpush1.xpose.msra.mxu0 0.0
        %288 = vmatprep.subr.mxu0 0.0
        %289 = vmatpush1.xpose.msra.mxu0 0.0
        %290 = vmatprep.subr.mxu0 0.0
        %291 = vmatpush1.xpose.msra.mxu0 0.0
        %292 = vmatprep.subr.mxu0 0.0
        %293 = vmatpush1.xpose.msra.mxu0 0.0
        %294 = vmatprep.subr.mxu0 0.0
        %295 = vmatpush1.xpose.msra.mxu0 0.0
        %296 = vmatprep.subr.mxu0 0.0
        %297 = vmatpush1.xpose.msra.mxu0 0.0
        %298 = vmatprep.subr.mxu0 0.0
        %299 = vmatpush1.xpose.msra.mxu0 0.0
        %300 = vmatprep.subr.mxu0 0.0
        %301 = vmatpush1.xpose.msra.mxu0 0.0
        %302 = vmatprep.subr.mxu0 0.0
        %303 = vmatpush1.xpose.msra.mxu0 0.0
        %304 = vmatprep.subr.mxu0 0.0
        %305 = vmatpush1.xpose.msra.mxu0 0.0
        %306 = vmatprep.subr.mxu0 0.0
        %307 = vmatpush1.xpose.msra.mxu0 0.0
        %308 = vmatprep.subr.mxu0 0.0
        %309 = vmatpush1.xpose.msra.mxu0 0.0
        %310 = vmatprep.subr.mxu0 0.0
        %311 = vmatpush1.xpose.msra.mxu0 0.0
        %312 = vmatprep.subr.mxu0 0.0
        %313 = vmatpush1.xpose.msra.mxu0 0.0
        %314 = vmatprep.subr.mxu0 0.0
        %315 = vmatpush1.xpose.msra.mxu0 0.0
        %316 = vmatprep.mubr.f32.mxu0 0.0
        %317 = vmatmul.mubr.f32.gmra.mrb[0].mxu0 %v223
        %v318 = vpop.f32.mrb[0].mxu0
        %v319 = vadd.f32 0.0, %v318
        %v320 = vpop.f32.mrb[0].mxu0
        %321 = vmatprep.mubr.f32.mxu0 0.0
        %322 = vmatmul.mubr.f32.gmra.mrb[0].mxu0 %v226
        %v323 = vpop.f32.mrb[0].mxu0
        %v324 = vadd.f32 0.0, %v323
        %v325 = vpop.f32.mrb[0].mxu0
        %326 = vmatprep.mubr.f32.mxu0 0.0
        %327 = vmatmul.mubr.f32.gmra.mrb[0].mxu0 %v229
        %v328 = vpop.f32.mrb[0].mxu0
        %v329 = vadd.f32 0.0, %v328
        %v330 = vpop.f32.mrb[0].mxu0
        %331 = vmatprep.mubr.f32.mxu0 0.0
        %332 = vmatmul.mubr.f32.gmra.mrb[0].mxu0 %v232
        %v333 = vpop.f32.mrb[0].mxu0
        %v334 = vadd.f32 0.0, %v333
        %v335 = vpop.f32.mrb[0].mxu0
        %336 = vmatprep.mubr.f32.mxu0 0.0
        %337 = vmatmul.mubr.f32.gmra.mrb[0].mxu0 %v235
        %v338 = vpop.f32.mrb[0].mxu0
        %v339 = vadd.f32 0.0, %v338
        %v340 = vpop.f32.mrb[0].mxu0
        %341 = vmatprep.mubr.f32.mxu0 0.0
        %342 = vmatmul.mubr.f32.gmra.mrb[0].mxu0 %v238
        %v343 = vpop.f32.mrb[0].mxu0
        %v344 = vadd.f32 0.0, %v343
        %v345 = vpop.f32.mrb[0].mxu0
        %346 = vmatprep.mubr.f32.mxu0 0.0
        %347 = vmatmul.mubr.f32.gmra.mrb[0].mxu0 %v241
        %v348 = vpop.f32.mrb[0].mxu0
        %v349 = vadd.f32 0.0, %v348
        %v350 = vpop.f32.mrb[0].mxu0
        %351 = vmatprep.mubr.f32.mxu0 0.0
        %352 = vmatmul.mubr.f32.gmra.mrb[0].mxu0 %v244
        %v353 = vpop.f32.mrb[0].mxu0
        %v354 = vadd.f32 0.0, %v353
        %v355 = vpop.f32.mrb[0].mxu0
        %356 = vdwg.mxu0
        %357 = vst.msk [vmem:[#allocation2] sm:$0xff] %vm221, %v319
        %358 = vst.msk [vmem:[#allocation2 + $0x8] sm:$0xff] %vm221, %v324
        %359 = vst.msk [vmem:[#allocation2 + $0x10] sm:$0xff] %vm221, %v329
        %360 = vst.msk [vmem:[#allocation2 + $0x18] sm:$0xff] %vm221, %v334
        %361 = vst.msk [vmem:[#allocation2 + $0x20] sm:$0xff] %vm221, %v339
        %362 = vst.msk [vmem:[#allocation2 + $0x28] sm:$0xff] %vm221, %v344
        %363 = vst.msk [vmem:[#allocation2 + $0x30] sm:$0xff] %vm221, %v349
        %364 = vst.msk [vmem:[#allocation2 + $0x38] sm:$0xff] %vm221, %v354
        %v365 = vld [vmem:[#allocation2] sm:$0xff]
        %v366 = vld [vmem:[#allocation2 + $0x8] sm:$0xff]
        %v368 = vsel %vm221, %v209, 0
        %v371 = vsel %vm221, %v210, 0
        %373 = vmatprep.subr.mxu0 0.0
        %374 = vmatpush1.msra.mxu0 %v365
        %375 = vmatprep.subr.mxu0 0.0
        %376 = vmatpush1.msra.mxu0 %v366
        %377 = vmatprep.subr.mxu0 0.0
        %378 = vmatpush1.msra.mxu0 0.0
        %379 = vmatprep.subr.mxu0 0.0
        %380 = vmatpush1.msra.mxu0 0.0
        %381 = vmatprep.subr.mxu0 0.0
        %382 = vmatpush1.msra.mxu0 0.0
        %383 = vmatprep.subr.mxu0 0.0
        %384 = vmatpush1.msra.mxu0 0.0
        %385 = vmatprep.subr.mxu0 0.0
        %386 = vmatpush1.msra.mxu0 0.0
        %387 = vmatprep.subr.mxu0 0.0
        %388 = vmatpush1.msra.mxu0 0.0
        %389 = vmatprep.subr.mxu0 0.0
        %390 = vmatpush1.msra.mxu0 0.0
        %391 = vmatprep.subr.mxu0 0.0
        %392 = vmatpush1.msra.mxu0 0.0
        %393 = vmatprep.subr.mxu0 0.0
        %394 = vmatpush1.msra.mxu0 0.0
        %395 = vmatprep.subr.mxu0 0.0
        %396 = vmatpush1.msra.mxu0 0.0
        %397 = vmatprep.subr.mxu0 0.0
        %398 = vmatpush1.msra.mxu0 0.0
        %399 = vmatprep.subr.mxu0 0.0
        %400 = vmatpush1.msra.mxu0 0.0
        %401 = vmatprep.subr.mxu0 0.0
        %402 = vmatpush1.msra.mxu0 0.0
        %403 = vmatprep.subr.mxu0 0.0
        %404 = vmatpush1.msra.mxu0 0.0
        %405 = vmatprep.subr.mxu0 0.0
        %406 = vmatpush1.msra.mxu0 0.0
        %407 = vmatprep.subr.mxu0 0.0
        %408 = vmatpush1.msra.mxu0 0.0
        %409 = vmatprep.subr.mxu0 0.0
        %410 = vmatpush1.msra.mxu0 0.0
        %411 = vmatprep.subr.mxu0 0.0
        %412 = vmatpush1.msra.mxu0 0.0
        %413 = vmatprep.subr.mxu0 0.0
        %414 = vmatpush1.msra.mxu0 0.0
        %415 = vmatprep.subr.mxu0 0.0
        %416 = vmatpush1.msra.mxu0 0.0
        %417 = vmatprep.subr.mxu0 0.0
        %418 = vmatpush1.msra.mxu0 0.0
        %419 = vmatprep.subr.mxu0 0.0
        %420 = vmatpush1.msra.mxu0 0.0
        %421 = vmatprep.subr.mxu0 0.0
        %422 = vmatpush1.msra.mxu0 0.0
        %423 = vmatprep.subr.mxu0 0.0
        %424 = vmatpush1.msra.mxu0 0.0
        %425 = vmatprep.subr.mxu0 0.0
        %426 = vmatpush1.msra.mxu0 0.0
        %427 = vmatprep.subr.mxu0 0.0
        %428 = vmatpush1.msra.mxu0 0.0
        %429 = vmatprep.subr.mxu0 0.0
        %430 = vmatpush1.msra.mxu0 0.0
        %431 = vmatprep.subr.mxu0 0.0
        %432 = vmatpush1.msra.mxu0 0.0
        %433 = vmatprep.subr.mxu0 0.0
        %434 = vmatpush1.msra.mxu0 0.0
        %435 = vmatprep.subr.mxu0 0.0
        %436 = vmatpush1.msra.mxu0 0.0
        %437 = vmatprep.mubr.f32.mxu0 0.0
        %438 = vmatmul.mubr.f32.gmra.mrb[0].mxu0 %v368
        %v439 = vpop.f32.mrb[0].mxu0
        %v440 = vadd.f32 0.0, %v439
        %v441 = vpop.f32.mrb[0].mxu0
        %442 = vmatprep.mubr.f32.mxu0 0.0
        %443 = vmatmul.mubr.f32.gmra.mrb[0].mxu0 %v371
        %v444 = vpop.f32.mrb[0].mxu0
        %v445 = vadd.f32 0.0, %v444
        %v446 = vpop.f32.mrb[0].mxu0
        %447 = vdwg.mxu0
        %448 = vst.msk [vmem:[%s193] sm:$0xff] %vm221, %v440
        %449 = vst.msk [vmem:[%s193 + $0x8] sm:$0xff] %vm221, %v445
        %v450 = vld [vmem:[#allocation2 + $0x10] sm:$0xff]
        %v451 = vld [vmem:[#allocation2 + $0x18] sm:$0xff]
        %452 = vmatprep.subr.mxu0 0.0
        %453 = vmatpush1.msra.mxu0 %v450
        %454 = vmatprep.subr.mxu0 0.0
        %455 = vmatpush1.msra.mxu0 %v451
        %456 = vmatprep.subr.mxu0 0.0
        %457 = vmatpush1.msra.mxu0 0.0
        %458 = vmatprep.subr.mxu0 0.0
        %459 = vmatpush1.msra.mxu0 0.0
        %460 = vmatprep.subr.mxu0 0.0
        %461 = vmatpush1.msra.mxu0 0.0
        %462 = vmatprep.subr.mxu0 0.0
        %463 = vmatpush1.msra.mxu0 0.0
        %464 = vmatprep.subr.mxu0 0.0
        %465 = vmatpush1.msra.mxu0 0.0
        %466 = vmatprep.subr.mxu0 0.0
        %467 = vmatpush1.msra.mxu0 0.0
        %468 = vmatprep.subr.mxu0 0.0
        %469 = vmatpush1.msra.mxu0 0.0
        %470 = vmatprep.subr.mxu0 0.0
        %471 = vmatpush1.msra.mxu0 0.0
        %472 = vmatprep.subr.mxu0 0.0
        %473 = vmatpush1.msra.mxu0 0.0
        %474 = vmatprep.subr.mxu0 0.0
        %475 = vmatpush1.msra.mxu0 0.0
        %476 = vmatprep.subr.mxu0 0.0
        %477 = vmatpush1.msra.mxu0 0.0
        %478 = vmatprep.subr.mxu0 0.0
        %479 = vmatpush1.msra.mxu0 0.0
        %480 = vmatprep.subr.mxu0 0.0
        %481 = vmatpush1.msra.mxu0 0.0
        %482 = vmatprep.subr.mxu0 0.0
        %483 = vmatpush1.msra.mxu0 0.0
        %484 = vmatprep.subr.mxu0 0.0
        %485 = vmatpush1.msra.mxu0 0.0
        %486 = vmatprep.subr.mxu0 0.0
        %487 = vmatpush1.msra.mxu0 0.0
        %488 = vmatprep.subr.mxu0 0.0
        %489 = vmatpush1.msra.mxu0 0.0
        %490 = vmatprep.subr.mxu0 0.0
        %491 = vmatpush1.msra.mxu0 0.0
        %492 = vmatprep.subr.mxu0 0.0
        %493 = vmatpush1.msra.mxu0 0.0
        %494 = vmatprep.subr.mxu0 0.0
        %495 = vmatpush1.msra.mxu0 0.0
        %496 = vmatprep.subr.mxu0 0.0
        %497 = vmatpush1.msra.mxu0 0.0
        %498 = vmatprep.subr.mxu0 0.0
        %499 = vmatpush1.msra.mxu0 0.0
        %500 = vmatprep.subr.mxu0 0.0
        %501 = vmatpush1.msra.mxu0 0.0
        %502 = vmatprep.subr.mxu0 0.0
        %503 = vmatpush1.msra.mxu0 0.0
        %504 = vmatprep.subr.mxu0 0.0
        %505 = vmatpush1.msra.mxu0 0.0
        %506 = vmatprep.subr.mxu0 0.0
        %507 = vmatpush1.msra.mxu0 0.0
        %508 = vmatprep.subr.mxu0 0.0
        %509 = vmatpush1.msra.mxu0 0.0
        %510 = vmatprep.subr.mxu0 0.0
        %511 = vmatpush1.msra.mxu0 0.0
        %512 = vmatprep.subr.mxu0 0.0
        %513 = vmatpush1.msra.mxu0 0.0
        %514 = vmatprep.subr.mxu0 0.0
        %515 = vmatpush1.msra.mxu0 0.0
        %516 = vmatprep.mubr.f32.mxu0 0.0
        %517 = vmatmul.mubr.f32.gmra.mrb[0].mxu0 %v368
        %v518 = vpop.f32.mrb[0].mxu0
        %v519 = vadd.f32 0.0, %v518
        %v520 = vpop.f32.mrb[0].mxu0
        %521 = vmatprep.mubr.f32.mxu0 0.0
        %522 = vmatmul.mubr.f32.gmra.mrb[0].mxu0 %v371
        %v523 = vpop.f32.mrb[0].mxu0
        %v524 = vadd.f32 0.0, %v523
        %v525 = vpop.f32.mrb[0].mxu0
        %526 = vdwg.mxu0
        %527 = vst.msk [vmem:[%s193 + $0x10] sm:$0xff] %vm221, %v519
        %528 = vst.msk [vmem:[%s193 + $0x18] sm:$0xff] %vm221, %v524
        %v529 = vld [vmem:[#allocation2 + $0x20] sm:$0xff]
        %v530 = vld [vmem:[#allocation2 + $0x28] sm:$0xff]
        %531 = vmatprep.subr.mxu0 0.0
        %532 = vmatpush1.msra.mxu0 %v529
        %533 = vmatprep.subr.mxu0 0.0
        %534 = vmatpush1.msra.mxu0 %v530
        %535 = vmatprep.subr.mxu0 0.0
        %536 = vmatpush1.msra.mxu0 0.0
        %537 = vmatprep.subr.mxu0 0.0
        %538 = vmatpush1.msra.mxu0 0.0
        %539 = vmatprep.subr.mxu0 0.0
        %540 = vmatpush1.msra.mxu0 0.0
        %541 = vmatprep.subr.mxu0 0.0
        %542 = vmatpush1.msra.mxu0 0.0
        %543 = vmatprep.subr.mxu0 0.0
        %544 = vmatpush1.msra.mxu0 0.0
        %545 = vmatprep.subr.mxu0 0.0
        %546 = vmatpush1.msra.mxu0 0.0
        %547 = vmatprep.subr.mxu0 0.0
        %548 = vmatpush1.msra.mxu0 0.0
        %549 = vmatprep.subr.mxu0 0.0
        %550 = vmatpush1.msra.mxu0 0.0
        %551 = vmatprep.subr.mxu0 0.0
        %552 = vmatpush1.msra.mxu0 0.0
        %553 = vmatprep.subr.mxu0 0.0
        %554 = vmatpush1.msra.mxu0 0.0
        %555 = vmatprep.subr.mxu0 0.0
        %556 = vmatpush1.msra.mxu0 0.0
        %557 = vmatprep.subr.mxu0 0.0
        %558 = vmatpush1.msra.mxu0 0.0
        %559 = vmatprep.subr.mxu0 0.0
        %560 = vmatpush1.msra.mxu0 0.0
        %561 = vmatprep.subr.mxu0 0.0
        %562 = vmatpush1.msra.mxu0 0.0
        %563 = vmatprep.subr.mxu0 0.0
        %564 = vmatpush1.msra.mxu0 0.0
        %565 = vmatprep.subr.mxu0 0.0
        %566 = vmatpush1.msra.mxu0 0.0
        %567 = vmatprep.subr.mxu0 0.0
        %568 = vmatpush1.msra.mxu0 0.0
        %569 = vmatprep.subr.mxu0 0.0
        %570 = vmatpush1.msra.mxu0 0.0
        %571 = vmatprep.subr.mxu0 0.0
        %572 = vmatpush1.msra.mxu0 0.0
        %573 = vmatprep.subr.mxu0 0.0
        %574 = vmatpush1.msra.mxu0 0.0
        %575 = vmatprep.subr.mxu0 0.0
        %576 = vmatpush1.msra.mxu0 0.0
        %577 = vmatprep.subr.mxu0 0.0
        %578 = vmatpush1.msra.mxu0 0.0
        %579 = vmatprep.subr.mxu0 0.0
        %580 = vmatpush1.msra.mxu0 0.0
        %581 = vmatprep.subr.mxu0 0.0
        %582 = vmatpush1.msra.mxu0 0.0
        %583 = vmatprep.subr.mxu0 0.0
        %584 = vmatpush1.msra.mxu0 0.0
        %585 = vmatprep.subr.mxu0 0.0
        %586 = vmatpush1.msra.mxu0 0.0
        %587 = vmatprep.subr.mxu0 0.0
        %588 = vmatpush1.msra.mxu0 0.0
        %589 = vmatprep.subr.mxu0 0.0
        %590 = vmatpush1.msra.mxu0 0.0
        %591 = vmatprep.subr.mxu0 0.0
        %592 = vmatpush1.msra.mxu0 0.0
        %593 = vmatprep.subr.mxu0 0.0
        %594 = vmatpush1.msra.mxu0 0.0
        %595 = vmatprep.mubr.f32.mxu0 0.0
        %596 = vmatmul.mubr.f32.gmra.mrb[0].mxu0 %v368
        %v597 = vpop.f32.mrb[0].mxu0
        %v598 = vadd.f32 0.0, %v597
        %v599 = vpop.f32.mrb[0].mxu0
        %600 = vmatprep.mubr.f32.mxu0 0.0
        %601 = vmatmul.mubr.f32.gmra.mrb[0].mxu0 %v371
        %v602 = vpop.f32.mrb[0].mxu0
        %v603 = vadd.f32 0.0, %v602
        %v604 = vpop.f32.mrb[0].mxu0
        %605 = vdwg.mxu0
        %606 = vst.msk [vmem:[%s193 + $0x20] sm:$0xff] %vm221, %v598
        %607 = vst.msk [vmem:[%s193 + $0x28] sm:$0xff] %vm221, %v603
        %v608 = vld [vmem:[#allocation2 + $0x30] sm:$0xff]
        %v609 = vld [vmem:[#allocation2 + $0x38] sm:$0xff]
        %610 = vmatprep.subr.mxu0 0.0
        %611 = vmatpush1.msra.mxu0 %v608
        %612 = vmatprep.subr.mxu0 0.0
        %613 = vmatpush1.msra.mxu0 %v609
        %614 = vmatprep.subr.mxu0 0.0
        %615 = vmatpush1.msra.mxu0 0.0
        %616 = vmatprep.subr.mxu0 0.0
        %617 = vmatpush1.msra.mxu0 0.0
        %618 = vmatprep.subr.mxu0 0.0
        %619 = vmatpush1.msra.mxu0 0.0
        %620 = vmatprep.subr.mxu0 0.0
        %621 = vmatpush1.msra.mxu0 0.0
        %622 = vmatprep.subr.mxu0 0.0
        %623 = vmatpush1.msra.mxu0 0.0
        %624 = vmatprep.subr.mxu0 0.0
        %625 = vmatpush1.msra.mxu0 0.0
        %626 = vmatprep.subr.mxu0 0.0
        %627 = vmatpush1.msra.mxu0 0.0
        %628 = vmatprep.subr.mxu0 0.0
        %629 = vmatpush1.msra.mxu0 0.0
        %630 = vmatprep.subr.mxu0 0.0
        %631 = vmatpush1.msra.mxu0 0.0
        %632 = vmatprep.subr.mxu0 0.0
        %633 = vmatpush1.msra.mxu0 0.0
        %634 = vmatprep.subr.mxu0 0.0
        %635 = vmatpush1.msra.mxu0 0.0
        %636 = vmatprep.subr.mxu0 0.0
        %637 = vmatpush1.msra.mxu0 0.0
        %638 = vmatprep.subr.mxu0 0.0
        %639 = vmatpush1.msra.mxu0 0.0
        %640 = vmatprep.subr.mxu0 0.0
        %641 = vmatpush1.msra.mxu0 0.0
        %642 = vmatprep.subr.mxu0 0.0
        %643 = vmatpush1.msra.mxu0 0.0
        %644 = vmatprep.subr.mxu0 0.0
        %645 = vmatpush1.msra.mxu0 0.0
        %646 = vmatprep.subr.mxu0 0.0
        %647 = vmatpush1.msra.mxu0 0.0
        %648 = vmatprep.subr.mxu0 0.0
        %649 = vmatpush1.msra.mxu0 0.0
        %650 = vmatprep.subr.mxu0 0.0
        %651 = vmatpush1.msra.mxu0 0.0
        %652 = vmatprep.subr.mxu0 0.0
        %653 = vmatpush1.msra.mxu0 0.0
        %654 = vmatprep.subr.mxu0 0.0
        %655 = vmatpush1.msra.mxu0 0.0
        %656 = vmatprep.subr.mxu0 0.0
        %657 = vmatpush1.msra.mxu0 0.0
        %658 = vmatprep.subr.mxu0 0.0
        %659 = vmatpush1.msra.mxu0 0.0
        %660 = vmatprep.subr.mxu0 0.0
        %661 = vmatpush1.msra.mxu0 0.0
        %662 = vmatprep.subr.mxu0 0.0
        %663 = vmatpush1.msra.mxu0 0.0
        %664 = vmatprep.subr.mxu0 0.0
        %665 = vmatpush1.msra.mxu0 0.0
        %666 = vmatprep.subr.mxu0 0.0
        %667 = vmatpush1.msra.mxu0 0.0
        %668 = vmatprep.subr.mxu0 0.0
        %669 = vmatpush1.msra.mxu0 0.0
        %670 = vmatprep.subr.mxu0 0.0
        %671 = vmatpush1.msra.mxu0 0.0
        %672 = vmatprep.subr.mxu0 0.0
        %673 = vmatpush1.msra.mxu0 0.0
        %674 = vmatprep.mubr.f32.mxu0 0.0
        %675 = vmatmul.mubr.f32.gmra.mrb[0].mxu0 %v368
        %v676 = vpop.f32.mrb[0].mxu0
        %v677 = vadd.f32 0.0, %v676
        %v678 = vpop.f32.mrb[0].mxu0
        %679 = vmatprep.mubr.f32.mxu0 0.0
        %680 = vmatmul.mubr.f32.gmra.mrb[0].mxu0 %v371
        %v681 = vpop.f32.mrb[0].mxu0
        %v682 = vadd.f32 0.0, %v681
        %v683 = vpop.f32.mrb[0].mxu0
        %684 = vdwg.mxu0
        %685 = vst.msk [vmem:[%s193 + $0x30] sm:$0xff] %vm221, %v677
        %686 = vst.msk [vmem:[%s193 + $0x38] sm:$0xff] %vm221, %v682
        %s687 = sand.u32 %s103, 1
        %s688 = scalar_lea.sflag [#allocation4], %s687
        %s689 = sand.u32 %s103, 1
        %s690 = smul.addr %s689, 64
        %s691 = scalar_lea.vmem [#allocation3], %s690
        // Predicated region
        $region33: #{random_shifts_aug.1} parent=31 // pred_check
          %p692 = pneg %p113
        $region34: #{random_shifts_aug.1} parent=31 // pred_check_branch
          %694 = sbr.rel (%p692) target = $region36
        $region35: #{random_shifts_aug.1} parent=31 // pred_region
          %s696 = ssub.s32 1024, 1024
          %697 = vsyncadd %s688, %s696
          %s698 = smul.addr %s17, 8
          %s699 = smul.addr %s698, 128
          %s700 = scalar_lea.hbm %s3, %s699
          %s701 = sshll.u32 %s691, 4
          %s702 = int_to_ptr.vmem [resolvable:$true] %s701
          %707 = dma.vmem_to_hbm [thread:$0]  %s702, 1024, %s700, %s688, 128, 128, 8
        $region36: #{random_shifts_aug.1} parent=31 // pred_fallthru
          _
      $region32: #{random_shifts_aug.1} parent=5 // pred_fallthru
        _
      %p708 = scmp.le.s32.totalorder 2, %s12
      // Predicated region
      $region37: #{random_shifts_aug.1} parent=5 // pred_check
        %p709 = pneg %p708
      $region38: #{random_shifts_aug.1} parent=5 // pred_check_branch
        %711 = sbr.rel (%p709) target = $region40
      $region39: #{random_shifts_aug.1} parent=5 // pred_region
        %s712 = ssub.s32 %s12, 2
        // Predicated region
        $region41: #{random_shifts_aug.1} parent=39 // pred_check
          %p713 = pneg %p119
        $region42: #{random_shifts_aug.1} parent=39 // pred_check_branch
          %715 = sbr.rel (%p713) target = $region44
        $region43: #{random_shifts_aug.1} parent=39 // pred_region
          %s716 = sand.u32 %s104, 1
          %s717 = scalar_lea.sflag [#allocation4], %s716
          %s718 = sand.u32 %s104, 1
          %s719 = smul.addr %s718, 64
          %s720 = scalar_lea.vmem [#allocation3], %s719
          %721 = dma.done %s717, 1024
        $region44: #{random_shifts_aug.1} parent=39 // pred_fallthru
          _
      $region40: #{random_shifts_aug.1} parent=5 // pred_fallthru
        _
    $region6: #{random_shifts_aug.1} parent=1 // loop_footer
      %s16 = sadd.s32 1, %s12
    $region7: #{random_shifts_aug.1} parent=1 // loop_footer_branch
      %11 = sbr.rel target = $region3
    $region8: #{random_shifts_aug.1} parent=1 // loop_exit
      _
    %722 = vsyncpa [#allocation4], 1
    %s723 = scalar_lea.sflag [#allocation4], 1
    %724 = vsyncpa %s723, 1

</llo_original>
